<compile_context>
chip_gen: v6e
topology: v6e:2x2x1
jax: 0.10.0
libtpu: 0.0.40
codegen_flags: <defaults>
</compile_context>

<pallas_src>
import functools

import jax
import jax.numpy as jnp
from jax.experimental import pallas as pl
from jax.experimental.pallas import tpu as pltpu


def _patchnce_kernel(q_ref, k_ref, loss_ref, *, inv_T, neg_fill, tq):
    # q_ref: (TQ, D), k_ref: (P, D) (batch dim squeezed), loss_ref: (1, TQ)
    q = q_ref[...]                                   # native dtype
    k = k_ref[...]                                   # native dtype
    P = k_ref.shape[0]

    # Pre-scale q by 1/T once (TQ*D mults); keep the MXU operands in the
    # input dtype so bf16 inputs use the full-rate matmul path.
    q32 = q.astype(jnp.float32) * inv_T              # (TQ, D) f32, scaled
    q_mm = q32.astype(q.dtype)                       # no-op cast for f32 input

    # Positive logits: q row i pairs with k row (qt*TQ + i).  Slice k to the
    # current query tile (static no-op branch when TQ == P).
    if tq == P:
        k_pos = k                                    # untiled query axis
    else:
        off = pl.multiple_of(pl.program_id(1) * tq, 128)
        k_pos = k_ref[pl.ds(off, tq), :]             # (TQ, D)
    pos = jnp.sum(q32 * k_pos.astype(jnp.float32), axis=-1, keepdims=True)  # (TQ,1)

    # Logits: s[i, j] = q_i . k_j / T.  Contract last dims of both operands —
    # no explicit transpose.  Row i's own column (global index qt*TQ+i)
    # already equals the positive logit (exactly for f32, ~bf16-rounded for
    # bf16 inputs), so no diagonal mask is needed.
    s = jax.lax.dot_general(
        q_mm, k,
        dimension_numbers=(((1,), (1,)), ((), ())),
        preferred_element_type=jnp.float32)          # (TQ, P)

    # logsumexp over concat([pos, neg_masked]) / T without masking:
    #   entries = {pos} ∪ {s[i,j], j != global_i} ∪ {-10/T},
    # and s[i, global_i] == pos, so
    #   sumexp = rowsum(exp(s - m)) + exp(-10/T - m).
    m = jnp.maximum(jnp.max(s, axis=-1, keepdims=True), neg_fill)       # (TQ,1)
    sumexp = (jnp.sum(jnp.exp(s - m), axis=-1, keepdims=True)
              + jnp.exp(neg_fill - m))                                  # (TQ,1)
    loss = m + jnp.log(sumexp) - pos                                    # (TQ,1)

    # Lane-dense store: flip the (TQ, 1) column to a (1, TQ) row.
    loss_ref[...] = loss.reshape(1, -1)


def _tpu_vmem_capacity_bytes():
    """Physical VMEM per core; conservative (v7x-sized) fallback on failure."""
    try:
        return int(pltpu.get_tpu_info().vmem_capacity_bytes)
    except Exception:
        return 64 << 20


def _pick_query_tile(P, *, logits_budget_bytes, min_tile=256, force_split=False):
    """Pick TQ: a 128-multiple divisor of P bounded by the live-temp budget.

    Live f32 temps per grid step: s and exp(s - m) coexist -> 2 * TQ * P * 4 B.
    Never silently falls back to TQ = P for large 128-divisible P (that was a
    (P, P) f32 temp blow-up); non-128-divisible P stays untiled (output lane
    dim must be a multiple of 128 or equal P).
    """
    if P % 128 != 0:
        return P  # TODO(synk): pad + mask last tile for large awkward P.

    divisors = [d for d in range(128, P + 1, 128) if P % d == 0]
    fitting = [d for d in divisors if 2 * d * P * 4 <= logits_budget_bytes]
    tq = max(fitting) if fitting else min(divisors)   # min(divisors) == 128

    # Raise the floor: TQ=128 under-fills the MXU M-dim and shrinks the
    # lane-dense (1, TQ) store; prefer >=256 rows when such a divisor exists.
    if tq < min_tile:
        bigger = [d for d in divisors if d >= min_tile]
        if bigger:
            tq = min(bigger)

    # Guarantee >=2 grid steps (both v7x TensorCores) when requested.
    if force_split and tq == P and (P // 2) % 128 == 0:
        tq = P // 2
    return tq


def patch_nce_loss(feat_q, feat_k, *, batch_size, nce_T,
                   nce_includes_all_negatives_from_minibatch=False):
    """Per-patch NCE loss, shape (num_patches,), float32."""
    num_patches, dim = feat_q.shape
    feat_k = jax.lax.stop_gradient(feat_k)            # feat_k.detach()

    B = 1 if nce_includes_all_negatives_from_minibatch else batch_size
    assert num_patches % B == 0
    P = num_patches // B

    q = feat_q.reshape(B, P, dim)
    k = feat_k.reshape(B, P, dim)

    # Per-generation VMEM budgets (v7x has 64 MiB/core; v5e/v6e have 128 MiB).
    vmem_cap = _tpu_vmem_capacity_bytes()
    small_vmem = vmem_cap < (96 << 20)
    if small_vmem:                                    # v7x-class
        logits_budget = 4 << 20
        vmem_cap_limit = 52 << 20
    else:                                             # v5e / v6e
        logits_budget = 16 << 20
        vmem_cap_limit = 100 << 20

    TQ = _pick_query_tile(P, logits_budget_bytes=logits_budget, min_tile=256,
                          force_split=(small_vmem and B == 1))
    assert P % TQ == 0
    n_qt = P // TQ

    kernel = functools.partial(
        _patchnce_kernel,
        inv_T=float(1.0 / nce_T),                     # plain Python floats ->
        neg_fill=float(-10.0 / nce_T),                # jaxpr literals
        tq=int(TQ))

    # k's block index depends only on b and is revisited across all qt steps:
    # on 64 MiB chips single-buffer it and spend the VMEM on the logits temp.
    k_spec_kwargs = {}
    k_bufs = 2
    if small_vmem and n_qt > 1:
        k_spec_kwargs = dict(pipeline_mode=pl.Buffered(1))
        k_bufs = 1

    # Explicit VMEM budget: pipelined q tiles + resident k + live f32 temps.
    itemsize = jnp.dtype(feat_q.dtype).itemsize
    vmem_bytes = (2 * TQ * dim * itemsize             # double-buffered q blocks
                  + k_bufs * P * dim * itemsize       # k blocks
                  + 2 * TQ * P * 4                    # f32 temps: s, exp(s - m)
                  + 2 * TQ * 4                        # output blocks
                  + (8 << 20))                        # compiler scratch headroom
    vmem_limit = int(min(max(vmem_bytes, 32 << 20), vmem_cap_limit))

    # Grid order (B, n_qt): qt MUST stay innermost so k's block index is
    # unchanged across consecutive steps (Pallas skips its re-DMA).
    loss = pl.pallas_call(
        kernel,
        out_shape=jax.ShapeDtypeStruct((B, 1, P), jnp.float32),
        grid_spec=pltpu.PrefetchScalarGridSpec(
            num_scalar_prefetch=0,
            grid=(B, n_qt),
            in_specs=[
                # batch dim squeezed out of the kernel refs (block dim None)
                pl.BlockSpec((None, TQ, dim), lambda b, qt: (b, qt, 0)),
                pl.BlockSpec((None, P, dim), lambda b, qt: (b, 0, 0),
                             **k_spec_kwargs),
            ],
            out_specs=pl.BlockSpec((None, 1, TQ), lambda b, qt: (b, 0, qt)),
        ),
        compiler_params=pltpu.CompilerParams(
            dimension_semantics=("parallel", "parallel"),
            vmem_limit_bytes=vmem_limit),
    )(q, k)

    return loss.reshape(num_patches)


def _reference(feat_q, feat_k, *, batch_size, nce_T,
               nce_includes_all_negatives_from_minibatch=False):
    num_patches, dim = feat_q.shape
    B = 1 if nce_includes_all_negatives_from_minibatch else batch_size
    P = num_patches // B
    q = feat_q.reshape(B, P, dim).astype(jnp.float32)
    k = feat_k.reshape(B, P, dim).astype(jnp.float32)
    l_pos = jnp.sum(q * k, axis=-1).reshape(-1, 1)
    l_neg = jnp.einsum("bpd,bqd->bpq", q, k)
    eye = jnp.eye(P, dtype=bool)[None]
    l_neg = jnp.where(eye, -10.0, l_neg).reshape(-1, P)
    out = jnp.concatenate([l_pos, l_neg], axis=1) / nce_T
    return jax.nn.logsumexp(out, axis=1) - out[:, 0]


if __name__ == "__main__":
    key = jax.random.PRNGKey(0)
    kq, kk = jax.random.split(key)

    batch_size = 2
    npatches_per_image = 8
    dim = 32
    nce_T = 0.07
    num_patches = batch_size * npatches_per_image

    feat_q = jax.random.normal(kq, (num_patches, dim), dtype=jnp.float32)
    feat_k = jax.random.normal(kk, (num_patches, dim), dtype=jnp.float32)

    # Per-minibatch negatives (batch_dim_for_bmm = batch_size).
    loss = patch_nce_loss(feat_q, feat_k, batch_size=batch_size, nce_T=nce_T)
    loss = jax.block_until_ready(loss)
    ref = _reference(feat_q, feat_k, batch_size=batch_size, nce_T=nce_T)
    assert loss.shape == (num_patches,)
    assert jnp.allclose(loss, ref, atol=1e-4, rtol=1e-4)

    # All negatives from the minibatch (batch_dim_for_bmm = 1).
    loss_all = patch_nce_loss(
        feat_q, feat_k, batch_size=batch_size, nce_T=nce_T,
        nce_includes_all_negatives_from_minibatch=True)
    loss_all = jax.block_until_ready(loss_all)
    ref_all = _reference(
        feat_q, feat_k, batch_size=batch_size, nce_T=nce_T,
        nce_includes_all_negatives_from_minibatch=True)
    assert jnp.allclose(loss_all, ref_all, atol=1e-4, rtol=1e-4)

    # Exercise the tiled-query path (TQ < P) that the review flagged: P = 512
    # divisible by 128, tiny temp budget forces >=2 query tiles.
    P_big, dim_big = 512, 64
    kq2, kk2 = jax.random.split(jax.random.PRNGKey(1))
    fq2 = jax.random.normal(kq2, (P_big, dim_big), dtype=jnp.float32)
    fk2 = jax.random.normal(kk2, (P_big, dim_big), dtype=jnp.float32)
    assert _pick_query_tile(P_big, logits_budget_bytes=2 * 256 * P_big * 4) < P_big
    loss_big = patch_nce_loss(fq2, fk2, batch_size=1, nce_T=nce_T)
    loss_big = jax.block_until_ready(loss_big)
    ref_big = _reference(fq2, fk2, batch_size=1, nce_T=nce_T)
    assert jnp.allclose(loss_big, ref_big, atol=1e-3, rtol=1e-4)

    print("KERNEL_OK")
</pallas_src>

<mosaic_0001>
module attributes {stable_mosaic.version = 11 : i64} {
  func.func @_patchnce_kernel(%arg0: i32, %arg1: i32, %arg2: memref<1x8x32xf32, #tpu.memory_space<vmem>>, %arg3: memref<1x8x32xf32, #tpu.memory_space<vmem>>, %arg4: memref<1x1x8xf32, #tpu.memory_space<vmem>>) attributes {dimension_semantics = [#tpu.dimension_semantics<parallel>, #tpu.dimension_semantics<parallel>], iteration_bounds = array<i64: 2, 1>, scalar_prefetch = 0 : i64, scratch_operands = 0 : i64, tpu.core_type = #tpu.core_type<tc>, window_params = [{transform_indices = @transform_0, window_bounds = array<i64: 1, 8, 32>}, {transform_indices = @transform_1, window_bounds = array<i64: 1, 8, 32>}, {transform_indices = @transform_2, window_bounds = array<i64: 1, 1, 8>}]} {
    %c0 = arith.constant 0 : index
    %c0_0 = arith.constant 0 : index
    %c0_1 = arith.constant 0 : index
    %0 = vector.load %arg2[%c0, %c0_0, %c0_1] : memref<1x8x32xf32, #tpu.memory_space<vmem>>, vector<1x8x32xf32>
    %1 = vector.shape_cast %0 : vector<1x8x32xf32> to vector<8x32xf32>
    %c0_2 = arith.constant 0 : index
    %c0_3 = arith.constant 0 : index
    %c0_4 = arith.constant 0 : index
    %2 = vector.load %arg3[%c0_2, %c0_3, %c0_4] : memref<1x8x32xf32, #tpu.memory_space<vmem>>, vector<1x8x32xf32>
    %3 = vector.shape_cast %2 : vector<1x8x32xf32> to vector<8x32xf32>
    %cst = arith.constant 14.2857141 : f32
    %4 = vector.broadcast %cst : f32 to vector<8x32xf32>
    %5 = arith.mulf %1, %4 : vector<8x32xf32>
    %6 = arith.mulf %5, %3 : vector<8x32xf32>
    %cst_5 = arith.constant dense<0.000000e+00> : vector<8xf32>
    %7 = vector.multi_reduction <add>, %6, %cst_5 [1] : vector<8x32xf32> to vector<8xf32>
    %8 = vector.shape_cast %7 : vector<8xf32> to vector<8x1xf32>
    %cst_6 = arith.constant dense<0.000000e+00> : vector<8x8xf32>
    %9 = tpu.matmul %5, %3, %cst_6 {dimension_numbers = #tpu.dot_dimension_numbers<[1], [1], [0], [0], [0, 0, 1, 0], [], []>} : vector<8x32xf32>, vector<8x32xf32>, vector<8x8xf32> -> vector<8x8xf32>
    %cst_7 = arith.constant dense<0xFF800000> : vector<8xf32>
    %10 = vector.multi_reduction <maximumf>, %9, %cst_7 [1] : vector<8x8xf32> to vector<8xf32>
    %11 = vector.shape_cast %10 : vector<8xf32> to vector<8x1xf32>
    %cst_8 = arith.constant -142.857147 : f32
    %12 = vector.broadcast %cst_8 : f32 to vector<8x1xf32>
    %13 = arith.maximumf %11, %12 : vector<8x1xf32>
    %14 = vector.broadcast %13 : vector<8x1xf32> to vector<8x8xf32>
    %15 = arith.subf %9, %14 : vector<8x8xf32>
    %16 = math.exp %15 : vector<8x8xf32>
    %cst_9 = arith.constant dense<0.000000e+00> : vector<8xf32>
    %17 = vector.multi_reduction <add>, %16, %cst_9 [1] : vector<8x8xf32> to vector<8xf32>
    %18 = vector.shape_cast %17 : vector<8xf32> to vector<8x1xf32>
    %cst_10 = arith.constant -142.857147 : f32
    %19 = vector.broadcast %cst_10 : f32 to vector<8x1xf32>
    %20 = arith.subf %19, %13 : vector<8x1xf32>
    %21 = math.exp %20 : vector<8x1xf32>
    %22 = arith.addf %18, %21 : vector<8x1xf32>
    %23 = math.log %22 : vector<8x1xf32>
    %24 = arith.addf %13, %23 : vector<8x1xf32>
    %25 = arith.subf %24, %8 : vector<8x1xf32>
    %26 = vector.shape_cast %25 : vector<8x1xf32> to vector<1x8xf32>
    %c0_11 = arith.constant 0 : index
    %c0_12 = arith.constant 0 : index
    %c0_13 = arith.constant 0 : index
    %27 = vector.load %arg4[%c0_11, %c0_12, %c0_13] : memref<1x1x8xf32, #tpu.memory_space<vmem>>, vector<1x1x8xf32>
    %28 = vector.shape_cast %27 : vector<1x1x8xf32> to vector<1x8xf32>
    %29 = vector.shape_cast %26 : vector<1x8xf32> to vector<1x1x8xf32>
    tpu.vector_store %arg4[%c0_11, %c0_12, %c0_13], %29 {strides = array<i32>} : memref<1x1x8xf32, #tpu.memory_space<vmem>>, vector<1x1x8xf32>,
    return
  }
  func.func @transform_0(%arg0: i32, %arg1: i32) -> (i32, i32, i32) {
    %c0_i32 = arith.constant 0 : i32
    %c0_i32_0 = arith.constant 0 : i32
    return %arg0, %arg1, %c0_i32 : i32, i32, i32
  }
  func.func @transform_1(%arg0: i32, %arg1: i32) -> (i32, i32, i32) {
    %c0_i32 = arith.constant 0 : i32
    %c0_i32_0 = arith.constant 0 : i32
    %c0_i32_1 = arith.constant 0 : i32
    return %arg0, %c0_i32, %c0_i32_0 : i32, i32, i32
  }
  func.func @transform_2(%arg0: i32, %arg1: i32) -> (i32, i32, i32) {
    %c0_i32 = arith.constant 0 : i32
    %c0_i32_0 = arith.constant 0 : i32
    return %arg0, %c0_i32, %arg1 : i32, i32, i32
  }
}

</mosaic_0001>

<llo_original>
// kernel: tpu_custom_call.1
$region0: #{tpu_custom_call.1}
  #allocation0 [shape = 'u32[]', space=smem, size = 0x4, offset = 0x4, fixed_abs, tag = 'smem constant byte address 0x4 - core index']
  #allocation1 [shape = 'u32[144,128]{1,0:T(1,128)}', space=vmem, size = 0x12000, scoped, tag = 'internal scratch']
  %s0 = inlined_call_operand.hbm [shape: f32[2,8,32], index: 0, kind: input, shape index: {}]
  %s1 = inlined_call_operand.hbm [shape: f32[2,8,32], index: 1, kind: input, shape index: {}]
  %s2 = inlined_call_operand.hbm [shape: f32[2,1,8], index: 2, kind: output, shape index: {}]
  %s3 = sld [smem:[#allocation0]]
  $region49: #{tpu_custom_call.1} parent=0
    _
  %s5 = ssub.s32 1, %s3
  %s6 = scalar_select 0, %s5, %s3
  $region1: #{tpu_custom_call.1} parent=0
    #allocation2 [shape = 'u8[8192]{0}', space=vmem, size = 0x2000, scoped, tag = 'input window, operand 0']
    #allocation3 [shape = 's32[2]{0}', space=sflag, size = 0x8, scoped, tag = 'scoped memory for tpu_custom_call.1']
    #allocation4 [shape = 's32[2]{0}', space=sflag, size = 0x8, scoped, tag = 'scoped memory for tpu_custom_call.1']
    #allocation5 [shape = 'u8[8192]{0}', space=vmem, size = 0x2000, scoped, tag = 'input window, operand 1']
    #allocation6 [shape = 's32[2]{0}', space=sflag, size = 0x8, scoped, tag = 'scoped memory for tpu_custom_call.1']
    #allocation7 [shape = 'u8[1024]{0}', space=vmem, size = 0x400, scoped, tag = 'output window, operand 0']
    %7 = vsyncpa [#allocation3], 0
    %s8 = scalar_lea.sflag [#allocation3], 1
    %9 = vsyncpa %s8, 0
    %10 = vsyncpa [#allocation6], 0
    %s11 = scalar_lea.sflag [#allocation6], 1
    %12 = vsyncpa %s11, 0
    %13 = vsyncpa [#allocation4], 0
    %s14 = scalar_lea.sflag [#allocation4], 1
    %15 = vsyncpa %s14, 0
    loop: start=0, step=1, limit=4
    $region2: #{tpu_custom_call.1} parent=1 // loop_pre_header
      _
    $region3: #{tpu_custom_call.1} parent=1 // loop_header
      %s17 = sphi 0, %s21
      %p18 = scmp.ge.s32.totalorder %s17, 4
      %s24 = sphi 0, %s36
      %s25 = sphi 0, %s32
      %s26 = sphi 0, %s24
      %s27 = sphi 0, %s25
      %s28 = sphi 0, %s26
      %s29 = sphi 0, %s27
      %s41 = sphi 0, %s43
      %s44 = sphi 0, %s41
      %s45 = sphi 0, %s44
      %s61 = sphi 0, %s45
      %s67 = sphi 0, %s69
      %s70 = sphi 0, %s67
      %s71 = sphi 0, %s70
      %s87 = sphi 0, %s71
      %s95 = sphi 0, %s97
      %s98 = sphi 0, %s95
      %s99 = sphi 0, %s98
      %s115 = sphi 0, %s99
    $region4: #{tpu_custom_call.1} parent=1 // loop_header_branch
      %20 = sbr.rel (%p18) target = $region8
    $region5: #{tpu_custom_call.1} parent=1 // loop_body
      %s22 = ssub.s32 %s17, 1
      %s23 = ssub.s32 %s17, 2
      %s30 = sadd.s32 1, %s25
      %p31 = scmp.ge.s32.totalorder %s30, 1
      %s32 = scalar_select %p31, 0, %s30
      %s33 = sadd.s32 1, %s24
      %s34 = scalar_select %p31, %s33, %s24
      %p35 = scmp.ge.s32.totalorder %s34, 2
      %s36 = scalar_select %p35, 0, %s34
      %s37 = ssub.s32 %s24, %s36
      %s38 = ssub.s32 %s25, %s32
      %s39 = sor.u32 %s37, %s38
      %p40 = scmp.eq.s32.totalorder %s39, 0
      %s42 = sadd.s32 %s41, 1
      %s43 = scalar_select %p40, %s41, %s42
      %p46 = pneg %p40
      %p47 = scmp.eq.s32.totalorder %s17, 1
      %p48 = por %p46, %p47
      %p49 = scmp.ne.s32.totalorder %s41, %s44
      %p50 = scmp.eq.s32.totalorder %s17, 0
      %p51 = por %p49, %p50
      %p52 = scmp.ne.s32.totalorder %s41, %s44
      %p53 = scmp.eq.s32.totalorder %s22, 1
      %p54 = por %p52, %p53
      %p55 = scmp.ne.s32.totalorder %s44, %s45
      %p56 = scmp.eq.s32.totalorder %s22, 0
      %p57 = por %p55, %p56
      %p58 = scmp.ne.s32.totalorder %s44, %s45
      %p59 = scmp.eq.s32.totalorder %s23, 1
      %p60 = por %p58, %p59
      %p62 = scmp.ne.s32.totalorder %s45, %s61
      %p63 = scmp.eq.s32.totalorder %s23, 0
      %p64 = por %p62, %p63
      %s65 = ssub.s32 %s24, %s36
      %p66 = scmp.eq.s32.totalorder %s65, 0
      %s68 = sadd.s32 %s67, 1
      %s69 = scalar_select %p66, %s67, %s68
      %p72 = pneg %p66
      %p73 = scmp.eq.s32.totalorder %s17, 1
      %p74 = por %p72, %p73
      %p75 = scmp.ne.s32.totalorder %s67, %s70
      %p76 = scmp.eq.s32.totalorder %s17, 0
      %p77 = por %p75, %p76
      %p78 = scmp.ne.s32.totalorder %s67, %s70
      %p79 = scmp.eq.s32.totalorder %s22, 1
      %p80 = por %p78, %p79
      %p81 = scmp.ne.s32.totalorder %s70, %s71
      %p82 = scmp.eq.s32.totalorder %s22, 0
      %p83 = por %p81, %p82
      %p84 = scmp.ne.s32.totalorder %s70, %s71
      %p85 = scmp.eq.s32.totalorder %s23, 1
      %p86 = por %p84, %p85
      %p88 = scmp.ne.s32.totalorder %s71, %s87
      %p89 = scmp.eq.s32.totalorder %s23, 0
      %p90 = por %p88, %p89
      %s91 = ssub.s32 %s24, %s36
      %s92 = ssub.s32 %s25, %s32
      %s93 = sor.u32 %s91, %s92
      %p94 = scmp.eq.s32.totalorder %s93, 0
      %s96 = sadd.s32 %s95, 1
      %s97 = scalar_select %p94, %s95, %s96
      %p100 = pneg %p94
      %p101 = scmp.eq.s32.totalorder %s17, 1
      %p102 = por %p100, %p101
      %p103 = scmp.ne.s32.totalorder %s95, %s98
      %p104 = scmp.eq.s32.totalorder %s17, 0
      %p105 = por %p103, %p104
      %p106 = scmp.ne.s32.totalorder %s95, %s98
      %p107 = scmp.eq.s32.totalorder %s22, 1
      %p108 = por %p106, %p107
      %p109 = scmp.ne.s32.totalorder %s98, %s99
      %p110 = scmp.eq.s32.totalorder %s22, 0
      %p111 = por %p109, %p110
      %p112 = scmp.ne.s32.totalorder %s98, %s99
      %p113 = scmp.eq.s32.totalorder %s23, 1
      %p114 = por %p112, %p113
      %p116 = scmp.ne.s32.totalorder %s99, %s115
      %p117 = scmp.eq.s32.totalorder %s23, 0
      %p118 = por %p116, %p117
      %p119 = scmp.le.s32.totalorder 1, %s17
      %p120 = scmp.lt.s32.totalorder %s17, 3
      %p121 = pnand %p119, %p120
      %p122 = pneg %p121
      // Predicated region
      $region9: #{tpu_custom_call.1} parent=5 // pred_check
        _
      $region10: #{tpu_custom_call.1} parent=5 // pred_check_branch
        %124 = sbr.rel (%p121) target = $region12
      $region11: #{tpu_custom_call.1} parent=5 // pred_region
        %s125 = ssub.s32 %s17, 1
      $region12: #{tpu_custom_call.1} parent=5 // pred_fallthru
        _
      %p126 = scmp.lt.s32.totalorder %s17, 2
      // Predicated region
      $region13: #{tpu_custom_call.1} parent=5 // pred_check
        %p127 = pneg %p126
      $region14: #{tpu_custom_call.1} parent=5 // pred_check_branch
        %129 = sbr.rel (%p127) target = $region16
      $region15: #{tpu_custom_call.1} parent=5 // pred_region
        // Predicated region
        $region17: #{tpu_custom_call.1} parent=15 // pred_check
          %p130 = pneg %p51
        $region18: #{tpu_custom_call.1} parent=15 // pred_check_branch
          %132 = sbr.rel (%p130) target = $region20
        $region19: #{tpu_custom_call.1} parent=15 // pred_region
          %s133 = sand.u32 %s41, 1
          %s134 = scalar_lea.sflag [#allocation3], %s133
          %s135 = sand.u32 %s41, 1
          %s136 = smul.addr %s135, 8
          %s137 = scalar_lea.vmem [#allocation2], %s136
          %s139 = ssub.s32 128, 128
          %140 = vsyncadd %s134, %s139
          %s141 = sadd.s32 %s25, %s24
          %s142 = smul.addr %s141, 128
          %s143 = scalar_lea.hbm %s0, %s142
          %s145 = sshll.u32 %s137, 4
          %s146 = int_to_ptr.vmem [resolvable:$true] %s145
          %148 = dma.hbm_to_vmem [thread:$0]  %s143, 128, %s146, %s134
        $region20: #{tpu_custom_call.1} parent=15 // pred_fallthru
          _
        // Predicated region
        $region21: #{tpu_custom_call.1} parent=15 // pred_check
          %p149 = pneg %p77
        $region22: #{tpu_custom_call.1} parent=15 // pred_check_branch
          %151 = sbr.rel (%p149) target = $region24
        $region23: #{tpu_custom_call.1} parent=15 // pred_region
          %s152 = sand.u32 %s67, 1
          %s153 = scalar_lea.sflag [#allocation6], %s152
          %s154 = sand.u32 %s67, 1
          %s155 = smul.addr %s154, 8
          %s156 = scalar_lea.vmem [#allocation5], %s155
          %s158 = ssub.s32 128, 128
          %159 = vsyncadd %s153, %s158
          %s160 = smul.addr %s24, 128
          %s161 = scalar_lea.hbm %s1, %s160
          %s163 = sshll.u32 %s156, 4
          %s164 = int_to_ptr.vmem [resolvable:$true] %s163
          %166 = dma.hbm_to_vmem [thread:$0]  %s161, 128, %s164, %s153
        $region24: #{tpu_custom_call.1} parent=15 // pred_fallthru
          _
      $region16: #{tpu_custom_call.1} parent=5 // pred_fallthru
        _
      %p167 = scmp.le.s32.totalorder 1, %s17
      %p168 = scmp.lt.s32.totalorder %s17, 3
      %p169 = pnand %p167, %p168
      %p170 = pneg %p169
      // Predicated region
      $region25: #{tpu_custom_call.1} parent=5 // pred_check
        _
      $region26: #{tpu_custom_call.1} parent=5 // pred_check_branch
        %172 = sbr.rel (%p169) target = $region28
      $region27: #{tpu_custom_call.1} parent=5 // pred_region
        %s173 = ssub.s32 %s17, 1
        %s174 = sand.u32 %s44, 1
        %s175 = scalar_lea.sflag [#allocation3], %s174
        %s176 = sand.u32 %s44, 1
        %s177 = smul.addr %s176, 8
        %s178 = scalar_lea.vmem [#allocation2], %s177
        // Predicated region
        $region29: #{tpu_custom_call.1} parent=27 // pred_check
          %p179 = pneg %p57
        $region30: #{tpu_custom_call.1} parent=27 // pred_check_branch
          %181 = sbr.rel (%p179) target = $region32
        $region31: #{tpu_custom_call.1} parent=27 // pred_region
          %182 = dma.done %s175, 128
        $region32: #{tpu_custom_call.1} parent=27 // pred_fallthru
          _
        %s183 = sand.u32 %s70, 1
        %s184 = scalar_lea.sflag [#allocation6], %s183
        %s185 = sand.u32 %s70, 1
        %s186 = smul.addr %s185, 8
        %s187 = scalar_lea.vmem [#allocation5], %s186
        // Predicated region
        $region33: #{tpu_custom_call.1} parent=27 // pred_check
          %p188 = pneg %p83
        $region34: #{tpu_custom_call.1} parent=27 // pred_check_branch
          %190 = sbr.rel (%p188) target = $region36
        $region35: #{tpu_custom_call.1} parent=27 // pred_region
          %191 = dma.done %s184, 128
        $region36: #{tpu_custom_call.1} parent=27 // pred_fallthru
          _
        %s192 = sand.u32 %s44, 1
        %s193 = scalar_lea.sflag [#allocation3], %s192
        %s194 = sand.u32 %s44, 1
        %s195 = smul.addr %s194, 8
        %s196 = scalar_lea.vmem [#allocation2], %s195
        %p197 = pneg %p57
        %p198 = pneg %p54
        %s199 = sand.u32 %s70, 1
        %s200 = scalar_lea.sflag [#allocation6], %s199
        %s201 = sand.u32 %s70, 1
        %s202 = smul.addr %s201, 8
        %s203 = scalar_lea.vmem [#allocation5], %s202
        %p204 = pneg %p83
        %p205 = pneg %p80
        %p206 = pneg %p111
        %p207 = pneg %p108
        %s208 = sand.u32 %s98, 1
        %s209 = scalar_lea.sflag [#allocation4], %s208
        %s210 = sand.u32 %s98, 1
        %s211 = scalar_lea.vmem [#allocation7], %s210
        %v212 = vld [vmem:[%s178] sm:$0xff]
        %v213 = vld [vmem:[%s187] sm:$0xff]
        %v214 = vmul.f32 %v212, 14.285714
        %v215 = vmul.f32 %v214, %v213
        %vm216 = vcmask 261120
        %v217 = vsel %vm216, %v215, 0.0
        %218 = vadd.xlane.f32.xlu0 %v217
        %v219 = vpop.xlane.xlu0 %218
        %v221 = vsel %vm216, %v214, 0
        %v224 = vsel %vm216, %v213, 0
        %226 = vmatprep.subr.mxu0 0.0
        %227 = vmatpush1.xpose.msra.mxu0 0.0
        %228 = vmatprep.subr.mxu0 0.0
        %229 = vmatpush1.xpose.msra.mxu0 0.0
        %230 = vmatprep.subr.mxu0 0.0
        %231 = vmatpush1.xpose.msra.mxu0 0.0
        %232 = vmatprep.subr.mxu0 0.0
        %233 = vmatpush1.xpose.msra.mxu0 0.0
        %234 = vmatprep.subr.mxu0 0.0
        %235 = vmatpush1.xpose.msra.mxu0 0.0
        %236 = vmatprep.subr.mxu0 0.0
        %237 = vmatpush1.xpose.msra.mxu0 0.0
        %238 = vmatprep.subr.mxu0 0.0
        %239 = vmatpush1.xpose.msra.mxu0 0.0
        %240 = vmatprep.subr.mxu0 0.0
        %241 = vmatpush1.xpose.msra.mxu0 0.0
        %242 = vmatprep.subr.mxu0 0.0
        %243 = vmatpush1.xpose.msra.mxu0 0.0
        %244 = vmatprep.subr.mxu0 0.0
        %245 = vmatpush1.xpose.msra.mxu0 0.0
        %246 = vmatprep.subr.mxu0 0.0
        %247 = vmatpush1.xpose.msra.mxu0 0.0
        %248 = vmatprep.subr.mxu0 0.0
        %249 = vmatpush1.xpose.msra.mxu0 0.0
        %250 = vmatprep.subr.mxu0 0.0
        %251 = vmatpush1.xpose.msra.mxu0 0.0
        %252 = vmatprep.subr.mxu0 0.0
        %253 = vmatpush1.xpose.msra.mxu0 0.0
        %254 = vmatprep.subr.mxu0 0.0
        %255 = vmatpush1.xpose.msra.mxu0 0.0
        %256 = vmatprep.subr.mxu0 0.0
        %257 = vmatpush1.xpose.msra.mxu0 %v224
        %258 = vmatprep.subr.mxu0 0.0
        %259 = vmatpush2.xpose.msra.mxu0 0.0
        %260 = vmatprep.subr.mxu0 0.0
        %261 = vmatpush2.xpose.msra.mxu0 0.0
        %262 = vmatprep.subr.mxu0 0.0
        %263 = vmatpush2.xpose.msra.mxu0 0.0
        %264 = vmatprep.subr.mxu0 0.0
        %265 = vmatpush2.xpose.msra.mxu0 0.0
        %266 = vmatprep.subr.mxu0 0.0
        %267 = vmatpush2.xpose.msra.mxu0 0.0
        %268 = vmatprep.subr.mxu0 0.0
        %269 = vmatpush2.xpose.msra.mxu0 0.0
        %270 = vmatprep.subr.mxu0 0.0
        %271 = vmatpush2.xpose.msra.mxu0 0.0
        %272 = vmatprep.subr.mxu0 0.0
        %273 = vmatpush2.xpose.msra.mxu0 0.0
        %274 = vmatprep.subr.mxu0 0.0
        %275 = vmatpush2.xpose.msra.mxu0 0.0
        %276 = vmatprep.subr.mxu0 0.0
        %277 = vmatpush2.xpose.msra.mxu0 0.0
        %278 = vmatprep.subr.mxu0 0.0
        %279 = vmatpush2.xpose.msra.mxu0 0.0
        %280 = vmatprep.subr.mxu0 0.0
        %281 = vmatpush2.xpose.msra.mxu0 0.0
        %282 = vmatprep.subr.mxu0 0.0
        %283 = vmatpush2.xpose.msra.mxu0 0.0
        %284 = vmatprep.subr.mxu0 0.0
        %285 = vmatpush2.xpose.msra.mxu0 0.0
        %286 = vmatprep.subr.mxu0 0.0
        %287 = vmatpush2.xpose.msra.mxu0 0.0
        %288 = vmatprep.subr.mxu0 0.0
        %289 = vmatpush2.xpose.msra.mxu0 0.0
        %290 = vmatprep.mubr.f32.mxu0 0.0
        %291 = vmatmul.mubr.f32.gmra.mxu0 %v221
        %v292 = vpop.f32.mrf.mxu0
        %v293 = vadd.f32 0.0, %v292
        %v294 = vpop.f32.mrf.mxu0
        %295 = vdwg.mxu0
        %vm296 = vcmask 64512
        %v297 = vsel %vm296, %v293, -inf
        %298 = vmax.xlane.f32.xlu0 %v297
        %v299 = vpop.xlane.xlu0 %298
        %v300 = vmax.f32 %v299, -142.85715
        %v301 = vsub.f32 %v293, %v300
        %v302 = vmul.f32 %v301, 1.442695
        %v303 = vpow.pop %v302
        %v304 = vsel %vm296, %v303, 0.0
        %305 = vadd.xlane.f32.xlu0 %v304
        %v306 = vpop.xlane.xlu0 %305
        %v307 = vsub.f32 -142.85715, %v300
        %v308 = vmul.f32 %v307, 1.442695
        %v309 = vpow.pop %v308
        %v310 = vadd.f32 %v306, %v309
        %v311 = vlog2.pop %v310
        %v312 = vmul.f32 %v311, 0.6931472
        %v313 = vadd.f32 %v300, %v312
        %v314 = vsub.f32 %v313, %v219
        %v316 = vlaneseq
        %v317 = vand.u32 %v316, 127
        %v318 = vlaneseq
        %v319 = vshrl.u32 %v318, 7
        %v320 = vsub.s32 %v317, %v319
        %v321 = vrot.slane %v314, %v320
        %vm323 = vcmask 57344
        %324 = vst.msk [vmem:[%s211] sm:$0x1] %vm323, %v321
        %s325 = sand.u32 %s98, 1
        %s326 = scalar_lea.sflag [#allocation4], %s325
        %s327 = sand.u32 %s98, 1
        %s328 = scalar_lea.vmem [#allocation7], %s327
        // Predicated region
        $region37: #{tpu_custom_call.1} parent=27 // pred_check
          %p329 = pneg %p108
        $region38: #{tpu_custom_call.1} parent=27 // pred_check_branch
          %331 = sbr.rel (%p329) target = $region40
        $region39: #{tpu_custom_call.1} parent=27 // pred_region
          %s333 = ssub.s32 16, 16
          %334 = vsyncadd %s326, %s333
          %s335 = sadd.s32 %s27, %s26
          %s336 = smul.addr %s335, 16
          %s337 = scalar_lea.hbm %s2, %s336
          %s339 = sshll.u32 %s328, 4
          %s340 = int_to_ptr.vmem [resolvable:$true] %s339
          %342 = dma.vmem_to_hbm [thread:$0]  %s340, 16, %s337, %s326
        $region40: #{tpu_custom_call.1} parent=27 // pred_fallthru
          _
      $region28: #{tpu_custom_call.1} parent=5 // pred_fallthru
        _
      %p343 = scmp.le.s32.totalorder 2, %s17
      // Predicated region
      $region41: #{tpu_custom_call.1} parent=5 // pred_check
        %p344 = pneg %p343
      $region42: #{tpu_custom_call.1} parent=5 // pred_check_branch
        %346 = sbr.rel (%p344) target = $region44
      $region43: #{tpu_custom_call.1} parent=5 // pred_region
        %s347 = ssub.s32 %s17, 2
        // Predicated region
        $region45: #{tpu_custom_call.1} parent=43 // pred_check
          %p348 = pneg %p114
        $region46: #{tpu_custom_call.1} parent=43 // pred_check_branch
          %350 = sbr.rel (%p348) target = $region48
        $region47: #{tpu_custom_call.1} parent=43 // pred_region
          %s351 = sand.u32 %s99, 1
          %s352 = scalar_lea.sflag [#allocation4], %s351
          %s353 = sand.u32 %s99, 1
          %s354 = scalar_lea.vmem [#allocation7], %s353
          %355 = dma.done %s352, 16
        $region48: #{tpu_custom_call.1} parent=43 // pred_fallthru
          _
      $region44: #{tpu_custom_call.1} parent=5 // pred_fallthru
        _
    $region6: #{tpu_custom_call.1} parent=1 // loop_footer
      %s21 = sadd.s32 1, %s17
    $region7: #{tpu_custom_call.1} parent=1 // loop_footer_branch
      %16 = sbr.rel target = $region3
    $region8: #{tpu_custom_call.1} parent=1 // loop_exit
      _
    %356 = vsyncpa [#allocation3], 1
    %s357 = scalar_lea.sflag [#allocation3], 1
    %358 = vsyncpa %s357, 1
    %359 = vsyncpa [#allocation6], 1
    %s360 = scalar_lea.sflag [#allocation6], 1
    %361 = vsyncpa %s360, 1
    %362 = vsyncpa [#allocation4], 1
    %s363 = scalar_lea.sflag [#allocation4], 1
    %364 = vsyncpa %s363, 1

</llo_original>
